<compile_context>
chip_gen: v7x
topology: tpu7x:2x2x1
jax: 0.10.0
libtpu: 0.0.40
codegen_flags: <defaults>
</compile_context>

<pallas_src>
import functools

import jax
import jax.numpy as jnp
from jax.experimental import pallas as pl
from jax.experimental.pallas import tpu as pltpu


PACK = 8    # logical rows packed per kernel row (one f32 sublane-group)
H2 = 63     # layer-2 width (fixed by the module)
H2P = 64    # layer-2 width padded inside the packed layout
H3 = 8      # layer-3 width (fixed by the module)


def _round_up(a, b):
    return (a + b - 1) // b * b


def _cdiv(a, b):
    return (a + b - 1) // b


def _block_diag(block, nblk, in_stride, out_stride):
    """(nblk*in_stride, nblk*out_stride) with `block` placed at each
    (j*in_stride, j*out_stride); the rest is zero (built once at init)."""
    fin, fout = block.shape
    out = jnp.zeros((nblk * in_stride, nblk * out_stride), block.dtype)
    for j in range(nblk):
        out = out.at[j * in_stride:j * in_stride + fin,
                     j * out_stride:j * out_stride + fout].set(block)
    return out


def _dqn_kernel(xp_ref, s8_ref,
                w1_ref, b1_ref,
                w2_ref, ws_ref, b2_ref,
                w3_ref, b3_ref,
                o_ref):
    # xp_ref: (tp, 8*h1)   packed x rows (8 logical rows per kernel row)
    # s8_ref: (tp, 8)      packed s values
    # o_ref : (tp, 8)      packed outputs
    bf16 = jnp.bfloat16
    f32 = jnp.float32
    prec = jax.lax.Precision.DEFAULT  # bf16 x bf16 -> single-pass MXU, f32 acc

    xp = xp_ref[...].astype(bf16)
    s8 = s8_ref[...].astype(bf16)

    # layer 1, packed/block-diagonal: each 8-sublane push covers 64 rows.
    hp = jnp.dot(xp, w1_ref[...], preferred_element_type=f32, precision=prec)
    hp = jnp.maximum(hp + b1_ref[...], 0.0)      # bias + ReLU in f32 (no bf16 VPU on v5e)
    # dropout -> identity (inference)

    # rank-1 contribution of s to layer 2 (== torch.cat([h, s], -1) @ W2's s row).
    st = jnp.dot(s8, ws_ref[...], preferred_element_type=f32, precision=prec)

    # layer 2, packed/block-diagonal.
    zp = jnp.dot(hp.astype(bf16), w2_ref[...], preferred_element_type=f32,
                 precision=prec)
    zp = jnp.maximum(zp + st + b2_ref[...], 0.0)
    # dropout -> identity (inference)

    # out layer, packed: plain matmul, no transposed dot_general.
    op = jnp.dot(zp.astype(bf16), w3_ref[...], preferred_element_type=f32,
                 precision=prec)
    o_ref[...] = (op + b3_ref[...]).astype(o_ref.dtype)


def init_params(key, bins_num):
    """PyTorch-Linear-style init + the packed bf16 weights used by the kernel."""
    h1 = bins_num * 2 + 4

    def linear(key, fan_in, fan_out):
        kw, kb = jax.random.split(key)
        bound = 1.0 / jnp.sqrt(jnp.float32(fan_in))
        w = jax.random.uniform(kw, (fan_in, fan_out), jnp.float32, -bound, bound)
        b = jax.random.uniform(kb, (1, fan_out), jnp.float32, -bound, bound)
        return w, b

    k1, k2, k3 = jax.random.split(key, 3)
    w1, b1 = linear(k1, h1, H2)          # layer1: h1 -> 63
    w2, b2 = linear(k2, H2 + 1, H3)      # layer2: 64 -> 8
    w3, b3 = linear(k3, H3, 1)           # out:    8 -> 1
    w2h, w2s = w2[:H2, :], w2[H2:, :]

    bf16 = jnp.bfloat16
    return dict(
        # unpacked f32 copies (reference / checkpoint compatibility)
        w1=w1, b1=b1, w2h=w2h, w2s=w2s, b2=b2, w3=w3, b3=b3,
        # packed, block-diagonal bf16 weights (built once; VMEM-resident)
        w1bd=_block_diag(w1, PACK, h1, H2P).astype(bf16),            # (8*h1, 512)
        b1bd=jnp.tile(jnp.pad(b1, ((0, 0), (0, H2P - H2))), (1, PACK)),  # (1, 512) f32
        w2bd=_block_diag(w2h, PACK, H2P, H3).astype(bf16),           # (512, 64)
        w2sbd=_block_diag(w2s, PACK, 1, H3).astype(bf16),            # (8, 64)
        b2bd=jnp.tile(b2, (1, PACK)),                                # (1, 64) f32
        w3bd=_block_diag(w3, PACK, H3, 1).astype(bf16),              # (64, 8)
        b3bd=jnp.tile(b3, (1, PACK)),                                # (1, 8) f32
    )


@functools.partial(jax.jit, static_argnames=("bins_num", "tile_m"))
def dqn_forward(params, x, s, seq_len, *, bins_num, tile_m=4096):
    """x: (B, matrix_num=1, T, bins_num*2+4);  s: (B, T);  returns (B, T)."""
    del seq_len  # unused in the reference forward pass as well
    batch, matrix_num, max_seq_len, feat = x.shape
    assert matrix_num == 1, "DQNNet fixes matrix_num = 1"
    assert feat == bins_num * 2 + 4
    h1 = feat

    M = batch * max_seq_len
    MP = _cdiv(M, PACK)                          # packed rows needed

    # Row tile in packed rows (multiple of 8 sublanes); default 4096 logical rows.
    tile_p = max(8, _round_up(max(tile_m, 64), PACK * 8) // PACK)
    # v7x: guarantee >= 2 grid steps (when M allows) so ("parallel",) can shard
    # across both TensorCores.  Harmless on single-TC v5e/v6e.
    tile_p = min(tile_p, max(8, _round_up(_cdiv(MP, 2), 8)))
    mp_pad = _round_up(MP, tile_p)
    rows_pad = mp_pad * PACK
    grid = (mp_pad // tile_p,)

    # --- glue: with matrix_num == 1 the reference permute+reshape is a squeeze,
    #     and the 8-row packing is a contiguous (free) reshape. ---
    x2d = x.reshape(M, h1)
    s1d = s.reshape(M)
    if rows_pad != M:
        x2d = jnp.pad(x2d, ((0, rows_pad - M), (0, 0)))
        s1d = jnp.pad(s1d, ((0, rows_pad - M),))
    xp = x2d.reshape(mp_pad, PACK * h1)          # 8 logical rows per packed row
    s8 = s1d.reshape(mp_pad, PACK)

    def _full(arr):  # weights: DMA'd once, VMEM-resident across grid steps
        return pl.BlockSpec(arr.shape, lambda i: (0, 0))

    in_specs = [
        pl.BlockSpec((tile_p, PACK * h1), lambda i: (i, 0)),   # packed x rows
        pl.BlockSpec((tile_p, PACK), lambda i: (i, 0)),        # packed s rows
        _full(params["w1bd"]), _full(params["b1bd"]),
        _full(params["w2bd"]), _full(params["w2sbd"]), _full(params["b2bd"]),
        _full(params["w3bd"]), _full(params["b3bd"]),
    ]
    out_spec = pl.BlockSpec((tile_p, PACK), lambda i: (i, 0))  # packed outputs

    out = pl.pallas_call(
        _dqn_kernel,
        grid=grid,
        in_specs=in_specs,
        out_specs=out_spec,
        out_shape=jax.ShapeDtypeStruct((mp_pad, PACK), jnp.float32),
        compiler_params=pltpu.CompilerParams(
            dimension_semantics=("parallel",),
            vmem_limit_bytes=32 * 1024 * 1024,
        ),
    )(xp, s8,
      params["w1bd"], params["b1bd"],
      params["w2bd"], params["w2sbd"], params["b2bd"],
      params["w3bd"], params["b3bd"])

    # (mp_pad, 8) -> (M,) is the inverse of the packing: contiguous, free.
    return out.reshape(rows_pad)[:M].reshape(batch, max_seq_len)


def _reference(params, x, s, bins_num):
    """Pure-JAX f32 reference (mirrors the PyTorch forward, dropout = identity)."""
    B, mn, T, feat = x.shape
    h1 = mn * (bins_num * 2 + 4)
    xr = jnp.transpose(x, (0, 2, 3, 1)).reshape(B, T, h1)
    h = jax.nn.relu(xr @ params["w1"] + params["b1"])
    z = jax.nn.relu(h @ params["w2h"] + s[..., None] * params["w2s"] + params["b2"])
    o = z @ params["w3"] + params["b3"]
    return o.reshape(B, T)


def _check(params, key, batch, max_seq_len, bins_num):
    feat = bins_num * 2 + 4
    kx, ks = jax.random.split(key)
    x = jax.random.normal(kx, (batch, 1, max_seq_len, feat), jnp.float32)
    s = jax.random.normal(ks, (batch, max_seq_len), jnp.float32)
    seq_len = jnp.full((batch,), max_seq_len, jnp.int32)

    y = jax.block_until_ready(dqn_forward(params, x, s, seq_len, bins_num=bins_num))
    assert y.shape == (batch, max_seq_len), y.shape

    y_ref = jax.block_until_ready(_reference(params, x, s, bins_num))
    # bf16 MXU operands vs f32 reference: relaxed tolerance (fan-ins are small).
    max_err = float(jnp.max(jnp.abs(y - y_ref)))
    assert max_err < 2e-2, f"kernel/reference mismatch: {max_err}"


if __name__ == "__main__":
    bins_num = 6                      # h1 = 2*6 + 4 = 16
    key = jax.random.PRNGKey(0)
    kp, k1, k2 = jax.random.split(key, 3)
    params = init_params(kp, bins_num)

    # Small shape matching the module (B=2, matrix_num=1, T=8, feat=16).
    _check(params, k1, batch=2, max_seq_len=8, bins_num=bins_num)
    # Uneven shape: exercises row padding + a multi-step ("parallel") grid.
    _check(params, k2, batch=3, max_seq_len=100, bins_num=bins_num)

    print("KERNEL_OK")
</pallas_src>

<mosaic_0001>
module attributes {stable_mosaic.version = 11 : i64} {
  func.func @_dqn_kernel(%arg0: i32, %arg1: memref<8x128xf32, #tpu.memory_space<vmem>>, %arg2: memref<8x8xf32, #tpu.memory_space<vmem>>, %arg3: memref<128x512xbf16, #tpu.memory_space<vmem>>, %arg4: memref<1x512xf32, #tpu.memory_space<vmem>>, %arg5: memref<512x64xbf16, #tpu.memory_space<vmem>>, %arg6: memref<8x64xbf16, #tpu.memory_space<vmem>>, %arg7: memref<1x64xf32, #tpu.memory_space<vmem>>, %arg8: memref<64x8xbf16, #tpu.memory_space<vmem>>, %arg9: memref<1x8xf32, #tpu.memory_space<vmem>>, %arg10: memref<8x8xf32, #tpu.memory_space<vmem>>) attributes {dimension_semantics = [#tpu.dimension_semantics<parallel>], iteration_bounds = array<i64: 1>, scalar_prefetch = 0 : i64, scratch_operands = 0 : i64, tpu.core_type = #tpu.core_type<tc>, window_params = [{transform_indices = @transform_0, window_bounds = array<i64: 8, 128>}, {transform_indices = @transform_1, window_bounds = array<i64: 8, 8>}, {pipeline_mode = #tpu.pipeline_mode<synchronous>, transform_indices = @transform_2, window_bounds = array<i64: 128, 512>}, {pipeline_mode = #tpu.pipeline_mode<synchronous>, transform_indices = @transform_3, window_bounds = array<i64: 1, 512>}, {pipeline_mode = #tpu.pipeline_mode<synchronous>, transform_indices = @transform_4, window_bounds = array<i64: 512, 64>}, {pipeline_mode = #tpu.pipeline_mode<synchronous>, transform_indices = @transform_5, window_bounds = array<i64: 8, 64>}, {pipeline_mode = #tpu.pipeline_mode<synchronous>, transform_indices = @transform_6, window_bounds = array<i64: 1, 64>}, {pipeline_mode = #tpu.pipeline_mode<synchronous>, transform_indices = @transform_7, window_bounds = array<i64: 64, 8>}, {pipeline_mode = #tpu.pipeline_mode<synchronous>, transform_indices = @transform_8, window_bounds = array<i64: 1, 8>}, {transform_indices = @transform_9, window_bounds = array<i64: 8, 8>}]} {
    %c0 = arith.constant 0 : index
    %c0_0 = arith.constant 0 : index
    %0 = vector.load %arg1[%c0, %c0_0] : memref<8x128xf32, #tpu.memory_space<vmem>>, vector<8x128xf32>
    %1 = arith.truncf %0 : vector<8x128xf32> to vector<8x128xbf16>
    %c0_1 = arith.constant 0 : index
    %c0_2 = arith.constant 0 : index
    %2 = vector.load %arg2[%c0_1, %c0_2] : memref<8x8xf32, #tpu.memory_space<vmem>>, vector<8x8xf32>
    %3 = arith.truncf %2 : vector<8x8xf32> to vector<8x8xbf16>
    %c0_3 = arith.constant 0 : index
    %c0_4 = arith.constant 0 : index
    %4 = vector.load %arg3[%c0_3, %c0_4] : memref<128x512xbf16, #tpu.memory_space<vmem>>, vector<128x512xbf16>
    %cst = arith.constant dense<0.000000e+00> : vector<8x512xf32>
    %5 = tpu.matmul %1, %4, %cst {dimension_numbers = #tpu.dot_dimension_numbers<[1], [0], [0], [1], [0, 0, 1, 1], [], []>} : vector<8x128xbf16>, vector<128x512xbf16>, vector<8x512xf32> -> vector<8x512xf32>
    %c0_5 = arith.constant 0 : index
    %c0_6 = arith.constant 0 : index
    %6 = vector.load %arg4[%c0_5, %c0_6] : memref<1x512xf32, #tpu.memory_space<vmem>>, vector<1x512xf32>
    %7 = vector.broadcast %6 : vector<1x512xf32> to vector<8x512xf32>
    %8 = arith.addf %5, %7 : vector<8x512xf32>
    %cst_7 = arith.constant 0.000000e+00 : f32
    %9 = vector.broadcast %cst_7 : f32 to vector<8x512xf32>
    %10 = arith.maximumf %8, %9 : vector<8x512xf32>
    %c0_8 = arith.constant 0 : index
    %c0_9 = arith.constant 0 : index
    %11 = vector.load %arg6[%c0_8, %c0_9] : memref<8x64xbf16, #tpu.memory_space<vmem>>, vector<8x64xbf16>
    %cst_10 = arith.constant dense<0.000000e+00> : vector<8x64xf32>
    %12 = tpu.matmul %3, %11, %cst_10 {dimension_numbers = #tpu.dot_dimension_numbers<[1], [0], [0], [1], [0, 0, 1, 1], [], []>} : vector<8x8xbf16>, vector<8x64xbf16>, vector<8x64xf32> -> vector<8x64xf32>
    %13 = arith.truncf %10 : vector<8x512xf32> to vector<8x512xbf16>
    %c0_11 = arith.constant 0 : index
    %c0_12 = arith.constant 0 : index
    %14 = vector.load %arg5[%c0_11, %c0_12] : memref<512x64xbf16, #tpu.memory_space<vmem>>, vector<512x64xbf16>
    %cst_13 = arith.constant dense<0.000000e+00> : vector<8x64xf32>
    %15 = tpu.matmul %13, %14, %cst_13 {dimension_numbers = #tpu.dot_dimension_numbers<[1], [0], [0], [1], [0, 0, 1, 1], [], []>} : vector<8x512xbf16>, vector<512x64xbf16>, vector<8x64xf32> -> vector<8x64xf32>
    %16 = arith.addf %15, %12 : vector<8x64xf32>
    %c0_14 = arith.constant 0 : index
    %c0_15 = arith.constant 0 : index
    %17 = vector.load %arg7[%c0_14, %c0_15] : memref<1x64xf32, #tpu.memory_space<vmem>>, vector<1x64xf32>
    %18 = vector.broadcast %17 : vector<1x64xf32> to vector<8x64xf32>
    %19 = arith.addf %16, %18 : vector<8x64xf32>
    %cst_16 = arith.constant 0.000000e+00 : f32
    %20 = vector.broadcast %cst_16 : f32 to vector<8x64xf32>
    %21 = arith.maximumf %19, %20 : vector<8x64xf32>
    %22 = arith.truncf %21 : vector<8x64xf32> to vector<8x64xbf16>
    %c0_17 = arith.constant 0 : index
    %c0_18 = arith.constant 0 : index
    %23 = vector.load %arg8[%c0_17, %c0_18] : memref<64x8xbf16, #tpu.memory_space<vmem>>, vector<64x8xbf16>
    %cst_19 = arith.constant dense<0.000000e+00> : vector<8x8xf32>
    %24 = tpu.matmul %22, %23, %cst_19 {dimension_numbers = #tpu.dot_dimension_numbers<[1], [0], [0], [1], [0, 0, 1, 1], [], []>} : vector<8x64xbf16>, vector<64x8xbf16>, vector<8x8xf32> -> vector<8x8xf32>
    %c0_20 = arith.constant 0 : index
    %c0_21 = arith.constant 0 : index
    %25 = vector.load %arg9[%c0_20, %c0_21] : memref<1x8xf32, #tpu.memory_space<vmem>>, vector<1x8xf32>
    %26 = vector.broadcast %25 : vector<1x8xf32> to vector<8x8xf32>
    %27 = arith.addf %24, %26 : vector<8x8xf32>
    %c0_22 = arith.constant 0 : index
    %c0_23 = arith.constant 0 : index
    %28 = vector.load %arg10[%c0_22, %c0_23] : memref<8x8xf32, #tpu.memory_space<vmem>>, vector<8x8xf32>
    tpu.vector_store %arg10[%c0_22, %c0_23], %27 {strides = array<i32>} : memref<8x8xf32, #tpu.memory_space<vmem>>, vector<8x8xf32>,
    return
  }
  func.func @transform_0(%arg0: i32) -> (i32, i32) {
    %c0_i32 = arith.constant 0 : i32
    %c0_i32_0 = arith.constant 0 : i32
    return %arg0, %c0_i32 : i32, i32
  }
  func.func @transform_1(%arg0: i32) -> (i32, i32) {
    %c0_i32 = arith.constant 0 : i32
    %c0_i32_0 = arith.constant 0 : i32
    return %arg0, %c0_i32 : i32, i32
  }
  func.func @transform_2(%arg0: i32) -> (i32, i32) {
    %c0_i32 = arith.constant 0 : i32
    %c0_i32_0 = arith.constant 0 : i32
    %c0_i32_1 = arith.constant 0 : i32
    return %c0_i32, %c0_i32_0 : i32, i32
  }
  func.func @transform_3(%arg0: i32) -> (i32, i32) {
    %c0_i32 = arith.constant 0 : i32
    %c0_i32_0 = arith.constant 0 : i32
    %c0_i32_1 = arith.constant 0 : i32
    return %c0_i32, %c0_i32_0 : i32, i32
  }
  func.func @transform_4(%arg0: i32) -> (i32, i32) {
    %c0_i32 = arith.constant 0 : i32
    %c0_i32_0 = arith.constant 0 : i32
    %c0_i32_1 = arith.constant 0 : i32
    return %c0_i32, %c0_i32_0 : i32, i32
  }
  func.func @transform_5(%arg0: i32) -> (i32, i32) {
    %c0_i32 = arith.constant 0 : i32
    %c0_i32_0 = arith.constant 0 : i32
    %c0_i32_1 = arith.constant 0 : i32
    return %c0_i32, %c0_i32_0 : i32, i32
  }
  func.func @transform_6(%arg0: i32) -> (i32, i32) {
    %c0_i32 = arith.constant 0 : i32
    %c0_i32_0 = arith.constant 0 : i32
    %c0_i32_1 = arith.constant 0 : i32
    return %c0_i32, %c0_i32_0 : i32, i32
  }
  func.func @transform_7(%arg0: i32) -> (i32, i32) {
    %c0_i32 = arith.constant 0 : i32
    %c0_i32_0 = arith.constant 0 : i32
    %c0_i32_1 = arith.constant 0 : i32
    return %c0_i32, %c0_i32_0 : i32, i32
  }
  func.func @transform_8(%arg0: i32) -> (i32, i32) {
    %c0_i32 = arith.constant 0 : i32
    %c0_i32_0 = arith.constant 0 : i32
    %c0_i32_1 = arith.constant 0 : i32
    return %c0_i32, %c0_i32_0 : i32, i32
  }
  func.func @transform_9(%arg0: i32) -> (i32, i32) {
    %c0_i32 = arith.constant 0 : i32
    %c0_i32_0 = arith.constant 0 : i32
    return %arg0, %c0_i32 : i32, i32
  }
}

</mosaic_0001>

<llo_original>
// kernel: dqn_forward.1
$region0: #{dqn_forward.1}
  #allocation0 [shape = 'u32[]', space=smem, size = 0x4, offset = 0x4, fixed_abs, tag = 'smem constant byte address 0x4 - core index']
  #allocation1 [shape = 'u32[144,128]{1,0:T(1,128)}', space=vmem, size = 0x12000, scoped, tag = 'internal scratch']
  %s0 = inlined_call_operand.vmem [shape: f32[8,128], index: 0, kind: input, shape index: {}]
  %s1 = inlined_call_operand.vmem [shape: f32[8,8], index: 1, kind: input, shape index: {}]
  %s2 = inlined_call_operand.vmem [shape: bf16[128,512], index: 2, kind: input, shape index: {}]
  %s3 = inlined_call_operand.vmem [shape: f32[1,512], index: 3, kind: input, shape index: {}]
  %s4 = inlined_call_operand.vmem [shape: bf16[512,64], index: 4, kind: input, shape index: {}]
  %s5 = inlined_call_operand.vmem [shape: bf16[8,64], index: 5, kind: input, shape index: {}]
  %s6 = inlined_call_operand.vmem [shape: f32[1,64], index: 6, kind: input, shape index: {}]
  %s7 = inlined_call_operand.vmem [shape: bf16[64,8], index: 7, kind: input, shape index: {}]
  %s8 = inlined_call_operand.vmem [shape: f32[1,8], index: 8, kind: input, shape index: {}]
  %s9 = inlined_call_operand.vmem [shape: f32[8,8], index: 9, kind: output, shape index: {}]
  %s10 = sld [smem:[#allocation0]]
  $region46: #{dqn_forward.1} parent=0
    _
  %s12 = ssub.s32 1, %s10
  %s13 = scalar_select 0, %s12, %s10
  // Predicated region
  $region2: #{dqn_forward.1} parent=0 // pred_check
    _
  $region3: #{dqn_forward.1} parent=0 // pred_check_branch
    %15 = sbr.rel (0) target = $region5
  $region4: #{dqn_forward.1} parent=0 // pred_region
    _
  $region5: #{dqn_forward.1} parent=0 // pred_fallthru
    _
  // Predicated region
  $region6: #{dqn_forward.1} parent=0 // pred_check
    _
  $region7: #{dqn_forward.1} parent=0 // pred_check_branch
    %17 = sbr.rel (0) target = $region9
  $region8: #{dqn_forward.1} parent=0 // pred_region
    _
  $region9: #{dqn_forward.1} parent=0 // pred_fallthru
    _
  // Predicated region
  $region10: #{dqn_forward.1} parent=0 // pred_check
    _
  $region11: #{dqn_forward.1} parent=0 // pred_check_branch
    %19 = sbr.rel (0) target = $region13
  $region12: #{dqn_forward.1} parent=0 // pred_region
    _
  $region13: #{dqn_forward.1} parent=0 // pred_fallthru
    _
  // Predicated region
  $region14: #{dqn_forward.1} parent=0 // pred_check
    _
  $region15: #{dqn_forward.1} parent=0 // pred_check_branch
    %21 = sbr.rel (0) target = $region17
  $region16: #{dqn_forward.1} parent=0 // pred_region
    _
  $region17: #{dqn_forward.1} parent=0 // pred_fallthru
    _
  // Predicated region
  $region18: #{dqn_forward.1} parent=0 // pred_check
    _
  $region19: #{dqn_forward.1} parent=0 // pred_check_branch
    %23 = sbr.rel (0) target = $region21
  $region20: #{dqn_forward.1} parent=0 // pred_region
    _
  $region21: #{dqn_forward.1} parent=0 // pred_fallthru
    _
  // Predicated region
  $region22: #{dqn_forward.1} parent=0 // pred_check
    _
  $region23: #{dqn_forward.1} parent=0 // pred_check_branch
    %25 = sbr.rel (0) target = $region25
  $region24: #{dqn_forward.1} parent=0 // pred_region
    _
  $region25: #{dqn_forward.1} parent=0 // pred_fallthru
    _
  // Predicated region
  $region26: #{dqn_forward.1} parent=0 // pred_check
    _
  $region27: #{dqn_forward.1} parent=0 // pred_check_branch
    %27 = sbr.rel (0) target = $region29
  $region28: #{dqn_forward.1} parent=0 // pred_region
    _
  $region29: #{dqn_forward.1} parent=0 // pred_fallthru
    _
  // Predicated region
  $region30: #{dqn_forward.1} parent=0 // pred_check
    _
  $region31: #{dqn_forward.1} parent=0 // pred_check_branch
    %29 = sbr.rel (0) target = $region33
  $region32: #{dqn_forward.1} parent=0 // pred_region
    _
  $region33: #{dqn_forward.1} parent=0 // pred_fallthru
    _
  // Predicated region
  $region34: #{dqn_forward.1} parent=0 // pred_check
    _
  $region35: #{dqn_forward.1} parent=0 // pred_check_branch
    %31 = sbr.rel (0) target = $region37
  $region36: #{dqn_forward.1} parent=0 // pred_region
    _
  $region37: #{dqn_forward.1} parent=0 // pred_fallthru
    _
  %v33 = vld [vmem:[%s0] sm:$0xff]
  %v34 = vpack.c.bf16 %v33, %v33
  %v35 = vld [vmem:[%s1] sm:$0xff]
  %v36 = vpack.c.bf16 %v35, %v35
  %v37 = vld [vmem:[%s2] sm:$0xff]
  %v38 = vld [vmem:[%s2 + $0x8] sm:$0xff]
  %v39 = vld [vmem:[%s2 + $0x10] sm:$0xff]
  %v40 = vld [vmem:[%s2 + $0x18] sm:$0xff]
  %v41 = vld [vmem:[%s2 + $0x20] sm:$0xff]
  %v42 = vld [vmem:[%s2 + $0x28] sm:$0xff]
  %v43 = vld [vmem:[%s2 + $0x30] sm:$0xff]
  %v44 = vld [vmem:[%s2 + $0x38] sm:$0xff]
  %v45 = vld [vmem:[%s2 + $0x40] sm:$0xff]
  %v46 = vld [vmem:[%s2 + $0x48] sm:$0xff]
  %v47 = vld [vmem:[%s2 + $0x50] sm:$0xff]
  %v48 = vld [vmem:[%s2 + $0x58] sm:$0xff]
  %v49 = vld [vmem:[%s2 + $0x60] sm:$0xff]
  %v50 = vld [vmem:[%s2 + $0x68] sm:$0xff]
  %v51 = vld [vmem:[%s2 + $0x70] sm:$0xff]
  %v52 = vld [vmem:[%s2 + $0x78] sm:$0xff]
  %v53 = vld [vmem:[%s2 + $0x80] sm:$0xff]
  %v54 = vld [vmem:[%s2 + $0x88] sm:$0xff]
  %v55 = vld [vmem:[%s2 + $0x90] sm:$0xff]
  %v56 = vld [vmem:[%s2 + $0x98] sm:$0xff]
  %v57 = vld [vmem:[%s2 + $0xa0] sm:$0xff]
  %v58 = vld [vmem:[%s2 + $0xa8] sm:$0xff]
  %v59 = vld [vmem:[%s2 + $0xb0] sm:$0xff]
  %v60 = vld [vmem:[%s2 + $0xb8] sm:$0xff]
  %v61 = vld [vmem:[%s2 + $0xc0] sm:$0xff]
  %v62 = vld [vmem:[%s2 + $0xc8] sm:$0xff]
  %v63 = vld [vmem:[%s2 + $0xd0] sm:$0xff]
  %v64 = vld [vmem:[%s2 + $0xd8] sm:$0xff]
  %v65 = vld [vmem:[%s2 + $0xe0] sm:$0xff]
  %v66 = vld [vmem:[%s2 + $0xe8] sm:$0xff]
  %v67 = vld [vmem:[%s2 + $0xf0] sm:$0xff]
  %v68 = vld [vmem:[%s2 + $0xf8] sm:$0xff]
  %v69 = vld [vmem:[%s3] sm:$0xf]
  %v71 = vlaneseq
  %v72 = vshrl.u32 %v71, 7
  %v73 = vsub.s32 0, %v72
  %v74 = vrot.slane %v69, %v73
  %v75 = vlaneseq
  %v76 = vshrl.u32 %v75, 7
  %v77 = vsub.s32 1, %v76
  %v78 = vrot.slane %v69, %v77
  %v79 = vlaneseq
  %v80 = vshrl.u32 %v79, 7
  %v81 = vsub.s32 2, %v80
  %v82 = vrot.slane %v69, %v81
  %v83 = vlaneseq
  %v84 = vshrl.u32 %v83, 7
  %v85 = vsub.s32 3, %v84
  %v86 = vrot.slane %v69, %v85
  %v123 = vunpack.c.l.b16 %v37
  %v124 = vunpack.c.h.b16 %v37
  %v125 = vunpack.c.l.b16 %v38
  %v126 = vunpack.c.h.b16 %v38
  %v127 = vunpack.c.l.b16 %v39
  %v128 = vunpack.c.h.b16 %v39
  %v129 = vunpack.c.l.b16 %v40
  %v130 = vunpack.c.h.b16 %v40
  %v131 = vunpack.c.l.b16 %v41
  %v132 = vunpack.c.h.b16 %v41
  %v133 = vunpack.c.l.b16 %v42
  %v134 = vunpack.c.h.b16 %v42
  %v135 = vunpack.c.l.b16 %v43
  %v136 = vunpack.c.h.b16 %v43
  %v137 = vunpack.c.l.b16 %v44
  %v138 = vunpack.c.h.b16 %v44
  %v139 = vunpack.c.l.b16 %v45
  %v140 = vunpack.c.h.b16 %v45
  %v141 = vunpack.c.l.b16 %v46
  %v142 = vunpack.c.h.b16 %v46
  %v143 = vunpack.c.l.b16 %v47
  %v144 = vunpack.c.h.b16 %v47
  %v145 = vunpack.c.l.b16 %v48
  %v146 = vunpack.c.h.b16 %v48
  %v147 = vunpack.c.l.b16 %v49
  %v148 = vunpack.c.h.b16 %v49
  %v149 = vunpack.c.l.b16 %v50
  %v150 = vunpack.c.h.b16 %v50
  %v151 = vunpack.c.l.b16 %v51
  %v152 = vunpack.c.h.b16 %v51
  %v153 = vunpack.c.l.b16 %v52
  %v154 = vunpack.c.h.b16 %v52
  %v155 = vunpack.c.l.b16 %v53
  %v156 = vunpack.c.h.b16 %v53
  %v157 = vunpack.c.l.b16 %v54
  %v158 = vunpack.c.h.b16 %v54
  %v159 = vunpack.c.l.b16 %v55
  %v160 = vunpack.c.h.b16 %v55
  %v161 = vunpack.c.l.b16 %v56
  %v162 = vunpack.c.h.b16 %v56
  %v163 = vunpack.c.l.b16 %v57
  %v164 = vunpack.c.h.b16 %v57
  %v165 = vunpack.c.l.b16 %v58
  %v166 = vunpack.c.h.b16 %v58
  %v167 = vunpack.c.l.b16 %v59
  %v168 = vunpack.c.h.b16 %v59
  %v169 = vunpack.c.l.b16 %v60
  %v170 = vunpack.c.h.b16 %v60
  %v171 = vunpack.c.l.b16 %v61
  %v172 = vunpack.c.h.b16 %v61
  %v173 = vunpack.c.l.b16 %v62
  %v174 = vunpack.c.h.b16 %v62
  %v175 = vunpack.c.l.b16 %v63
  %v176 = vunpack.c.h.b16 %v63
  %v177 = vunpack.c.l.b16 %v64
  %v178 = vunpack.c.h.b16 %v64
  %v179 = vunpack.c.l.b16 %v65
  %v180 = vunpack.c.h.b16 %v65
  %v181 = vunpack.c.l.b16 %v66
  %v182 = vunpack.c.h.b16 %v66
  %v183 = vunpack.c.l.b16 %v67
  %v184 = vunpack.c.h.b16 %v67
  %v185 = vunpack.c.l.b16 %v68
  %v186 = vunpack.c.h.b16 %v68
  %v187 = vpack.c.b16 %v127, %v123
  %v188 = vpack.c.b16 %v128, %v124
  %v189 = vpack.c.b16 %v129, %v125
  %v190 = vpack.c.b16 %v130, %v126
  %v191 = vpack.c.b16 %v135, %v131
  %v192 = vpack.c.b16 %v136, %v132
  %v193 = vpack.c.b16 %v137, %v133
  %v194 = vpack.c.b16 %v138, %v134
  %v195 = vpack.c.b16 %v143, %v139
  %v196 = vpack.c.b16 %v144, %v140
  %v197 = vpack.c.b16 %v145, %v141
  %v198 = vpack.c.b16 %v146, %v142
  %v199 = vpack.c.b16 %v151, %v147
  %v200 = vpack.c.b16 %v152, %v148
  %v201 = vpack.c.b16 %v153, %v149
  %v202 = vpack.c.b16 %v154, %v150
  %v203 = vpack.c.b16 %v159, %v155
  %v204 = vpack.c.b16 %v160, %v156
  %v205 = vpack.c.b16 %v161, %v157
  %v206 = vpack.c.b16 %v162, %v158
  %v207 = vpack.c.b16 %v167, %v163
  %v208 = vpack.c.b16 %v168, %v164
  %v209 = vpack.c.b16 %v169, %v165
  %v210 = vpack.c.b16 %v170, %v166
  %v211 = vpack.c.b16 %v175, %v171
  %v212 = vpack.c.b16 %v176, %v172
  %v213 = vpack.c.b16 %v177, %v173
  %v214 = vpack.c.b16 %v178, %v174
  %v215 = vpack.c.b16 %v183, %v179
  %v216 = vpack.c.b16 %v184, %v180
  %v217 = vpack.c.b16 %v185, %v181
  %v218 = vpack.c.b16 %v186, %v182
  %251 = vmatprep.subr.bf16.mxu0 %v188
  %252 = vmatpush1.bf16.msra.mxu0 %v187
  %253 = vmatprep.subr.bf16.mxu0 %v192
  %254 = vmatpush1.bf16.msra.mxu0 %v191
  %255 = vmatprep.subr.bf16.mxu0 %v196
  %256 = vmatpush1.bf16.msra.mxu0 %v195
  %257 = vmatprep.subr.bf16.mxu0 %v200
  %258 = vmatpush1.bf16.msra.mxu0 %v199
  %259 = vmatprep.subr.bf16.mxu0 %v204
  %260 = vmatpush1.bf16.msra.mxu0 %v203
  %261 = vmatprep.subr.bf16.mxu0 %v208
  %262 = vmatpush1.bf16.msra.mxu0 %v207
  %263 = vmatprep.subr.bf16.mxu0 %v212
  %264 = vmatpush1.bf16.msra.mxu0 %v211
  %265 = vmatprep.subr.bf16.mxu0 %v216
  %266 = vmatpush1.bf16.msra.mxu0 %v215
  %267 = vmatprep.subr.bf16.mxu0 0
  %268 = vmatpush1.bf16.msra.mxu0 0
  %269 = vmatprep.subr.bf16.mxu0 0
  %270 = vmatpush1.bf16.msra.mxu0 0
  %271 = vmatprep.subr.bf16.mxu0 0
  %272 = vmatpush1.bf16.msra.mxu0 0
  %273 = vmatprep.subr.bf16.mxu0 0
  %274 = vmatpush1.bf16.msra.mxu0 0
  %275 = vmatprep.subr.bf16.mxu0 0
  %276 = vmatpush1.bf16.msra.mxu0 0
  %277 = vmatprep.subr.bf16.mxu0 0
  %278 = vmatpush1.bf16.msra.mxu0 0
  %279 = vmatprep.subr.bf16.mxu0 0
  %280 = vmatpush1.bf16.msra.mxu0 0
  %281 = vmatprep.subr.bf16.mxu0 0
  %282 = vmatpush1.bf16.msra.mxu0 0
  %283 = vmatprep.mubr.bf16.mxu0 0
  %284 = vmatmul.mubr.bf16.gmra.mrb[0].mxu0 %v34
  %v285 = vpop.f32.mrb[0].mxu0
  %v286 = vadd.f32 %v74, %v285
  %v287 = vpop.f32.mrb[0].mxu0
  %v288 = vadd.f32 %v78, %v287
  %v289 = vpop.f32.mrb[0].mxu0
  %v290 = vpop.f32.mrb[0].mxu0
  %291 = vdwg.mxu0
  %292 = vmatprep.subr.bf16.mxu0 %v190
  %293 = vmatpush1.bf16.msra.mxu0 %v189
  %294 = vmatprep.subr.bf16.mxu0 %v194
  %295 = vmatpush1.bf16.msra.mxu0 %v193
  %296 = vmatprep.subr.bf16.mxu0 %v198
  %297 = vmatpush1.bf16.msra.mxu0 %v197
  %298 = vmatprep.subr.bf16.mxu0 %v202
  %299 = vmatpush1.bf16.msra.mxu0 %v201
  %300 = vmatprep.subr.bf16.mxu0 %v206
  %301 = vmatpush1.bf16.msra.mxu0 %v205
  %302 = vmatprep.subr.bf16.mxu0 %v210
  %303 = vmatpush1.bf16.msra.mxu0 %v209
  %304 = vmatprep.subr.bf16.mxu0 %v214
  %305 = vmatpush1.bf16.msra.mxu0 %v213
  %306 = vmatprep.subr.bf16.mxu0 %v218
  %307 = vmatpush1.bf16.msra.mxu0 %v217
  %308 = vmatprep.subr.bf16.mxu0 0
  %309 = vmatpush1.bf16.msra.mxu0 0
  %310 = vmatprep.subr.bf16.mxu0 0
  %311 = vmatpush1.bf16.msra.mxu0 0
  %312 = vmatprep.subr.bf16.mxu0 0
  %313 = vmatpush1.bf16.msra.mxu0 0
  %314 = vmatprep.subr.bf16.mxu0 0
  %315 = vmatpush1.bf16.msra.mxu0 0
  %316 = vmatprep.subr.bf16.mxu0 0
  %317 = vmatpush1.bf16.msra.mxu0 0
  %318 = vmatprep.subr.bf16.mxu0 0
  %319 = vmatpush1.bf16.msra.mxu0 0
  %320 = vmatprep.subr.bf16.mxu0 0
  %321 = vmatpush1.bf16.msra.mxu0 0
  %322 = vmatprep.subr.bf16.mxu0 0
  %323 = vmatpush1.bf16.msra.mxu0 0
  %324 = vmatprep.mubr.bf16.mxu0 0
  %325 = vmatmul.mubr.bf16.gmra.mrb[0].mxu0 %v34
  %v326 = vpop.f32.mrb[0].mxu0
  %v327 = vadd.f32 %v82, %v326
  %v328 = vpop.f32.mrb[0].mxu0
  %v329 = vadd.f32 %v86, %v328
  %v330 = vpop.f32.mrb[0].mxu0
  %v331 = vpop.f32.mrb[0].mxu0
  %332 = vdwg.mxu0
  %v333 = vmax.f32 %v286, 0.0
  %v334 = vmax.f32 %v288, 0.0
  %v335 = vmax.f32 %v327, 0.0
  %v336 = vmax.f32 %v329, 0.0
  %v337 = vld [vmem:[%s5] sm:$0xf]
  %vm338 = vcmask 64512
  %v340 = vsel %vm338, %v36, 0
  %vm342 = vcmask 1043456
  %v344 = vsel %vm342, %v337, 0
  %346 = vmatprep.subr.bf16.mxu0 0
  %347 = vmatpush1.bf16.msra.mxu0 %v344
  %348 = vmatprep.subr.bf16.mxu0 0
  %349 = vmatpush1.bf16.msra.mxu0 0
  %350 = vmatprep.subr.bf16.mxu0 0
  %351 = vmatpush1.bf16.msra.mxu0 0
  %352 = vmatprep.subr.bf16.mxu0 0
  %353 = vmatpush1.bf16.msra.mxu0 0
  %354 = vmatprep.subr.bf16.mxu0 0
  %355 = vmatpush1.bf16.msra.mxu0 0
  %356 = vmatprep.subr.bf16.mxu0 0
  %357 = vmatpush1.bf16.msra.mxu0 0
  %358 = vmatprep.subr.bf16.mxu0 0
  %359 = vmatpush1.bf16.msra.mxu0 0
  %360 = vmatprep.subr.bf16.mxu0 0
  %361 = vmatpush1.bf16.msra.mxu0 0
  %362 = vmatprep.subr.bf16.mxu0 0
  %363 = vmatpush1.bf16.msra.mxu0 0
  %364 = vmatprep.subr.bf16.mxu0 0
  %365 = vmatpush1.bf16.msra.mxu0 0
  %366 = vmatprep.subr.bf16.mxu0 0
  %367 = vmatpush1.bf16.msra.mxu0 0
  %368 = vmatprep.subr.bf16.mxu0 0
  %369 = vmatpush1.bf16.msra.mxu0 0
  %370 = vmatprep.subr.bf16.mxu0 0
  %371 = vmatpush1.bf16.msra.mxu0 0
  %372 = vmatprep.subr.bf16.mxu0 0
  %373 = vmatpush1.bf16.msra.mxu0 0
  %374 = vmatprep.subr.bf16.mxu0 0
  %375 = vmatpush1.bf16.msra.mxu0 0
  %376 = vmatprep.subr.bf16.mxu0 0
  %377 = vmatpush1.bf16.msra.mxu0 0
  %378 = vmatprep.mubr.bf16.mxu0 0
  %379 = vmatmul.mubr.bf16.gmra.mrb[0].mxu0 %v340
  %v380 = vpop.f32.mrb[0].mxu0
  %v381 = vadd.f32 0.0, %v380
  %v382 = vpop.f32.mrb[0].mxu0
  %v383 = vpop.f32.mrb[0].mxu0
  %v384 = vpop.f32.mrb[0].mxu0
  %385 = vdwg.mxu0
  %v386 = vpack.c.bf16 %v333, %v333
  %v387 = vpack.c.bf16 %v334, %v334
  %v388 = vpack.c.bf16 %v335, %v335
  %v389 = vpack.c.bf16 %v336, %v336
  %v390 = vld [vmem:[%s4] sm:$0xf]
  %v391 = vld [vmem:[%s4 + $0x4] sm:$0xf]
  %v392 = vld [vmem:[%s4 + $0x8] sm:$0xf]
  %v393 = vld [vmem:[%s4 + $0xc] sm:$0xf]
  %v394 = vld [vmem:[%s4 + $0x10] sm:$0xf]
  %v395 = vld [vmem:[%s4 + $0x14] sm:$0xf]
  %v396 = vld [vmem:[%s4 + $0x18] sm:$0xf]
  %v397 = vld [vmem:[%s4 + $0x1c] sm:$0xf]
  %v398 = vld [vmem:[%s4 + $0x20] sm:$0xf]
  %v399 = vld [vmem:[%s4 + $0x24] sm:$0xf]
  %v400 = vld [vmem:[%s4 + $0x28] sm:$0xf]
  %v401 = vld [vmem:[%s4 + $0x2c] sm:$0xf]
  %v402 = vld [vmem:[%s4 + $0x30] sm:$0xf]
  %v403 = vld [vmem:[%s4 + $0x34] sm:$0xf]
  %v404 = vld [vmem:[%s4 + $0x38] sm:$0xf]
  %v405 = vld [vmem:[%s4 + $0x3c] sm:$0xf]
  %v406 = vld [vmem:[%s4 + $0x40] sm:$0xf]
  %v407 = vld [vmem:[%s4 + $0x44] sm:$0xf]
  %v408 = vld [vmem:[%s4 + $0x48] sm:$0xf]
  %v409 = vld [vmem:[%s4 + $0x4c] sm:$0xf]
  %v410 = vld [vmem:[%s4 + $0x50] sm:$0xf]
  %v411 = vld [vmem:[%s4 + $0x54] sm:$0xf]
  %v412 = vld [vmem:[%s4 + $0x58] sm:$0xf]
  %v413 = vld [vmem:[%s4 + $0x5c] sm:$0xf]
  %v414 = vld [vmem:[%s4 + $0x60] sm:$0xf]
  %v415 = vld [vmem:[%s4 + $0x64] sm:$0xf]
  %v416 = vld [vmem:[%s4 + $0x68] sm:$0xf]
  %v417 = vld [vmem:[%s4 + $0x6c] sm:$0xf]
  %v418 = vld [vmem:[%s4 + $0x70] sm:$0xf]
  %v419 = vld [vmem:[%s4 + $0x74] sm:$0xf]
  %v420 = vld [vmem:[%s4 + $0x78] sm:$0xf]
  %v421 = vld [vmem:[%s4 + $0x7c] sm:$0xf]
  %v422 = vld [vmem:[%s4 + $0x80] sm:$0xf]
  %v423 = vld [vmem:[%s4 + $0x84] sm:$0xf]
  %v424 = vld [vmem:[%s4 + $0x88] sm:$0xf]
  %v425 = vld [vmem:[%s4 + $0x8c] sm:$0xf]
  %v426 = vld [vmem:[%s4 + $0x90] sm:$0xf]
  %v427 = vld [vmem:[%s4 + $0x94] sm:$0xf]
  %v428 = vld [vmem:[%s4 + $0x98] sm:$0xf]
  %v429 = vld [vmem:[%s4 + $0x9c] sm:$0xf]
  %v430 = vld [vmem:[%s4 + $0xa0] sm:$0xf]
  %v431 = vld [vmem:[%s4 + $0xa4] sm:$0xf]
  %v432 = vld [vmem:[%s4 + $0xa8] sm:$0xf]
  %v433 = vld [vmem:[%s4 + $0xac] sm:$0xf]
  %v434 = vld [vmem:[%s4 + $0xb0] sm:$0xf]
  %v435 = vld [vmem:[%s4 + $0xb4] sm:$0xf]
  %v436 = vld [vmem:[%s4 + $0xb8] sm:$0xf]
  %v437 = vld [vmem:[%s4 + $0xbc] sm:$0xf]
  %v438 = vld [vmem:[%s4 + $0xc0] sm:$0xf]
  %v439 = vld [vmem:[%s4 + $0xc4] sm:$0xf]
  %v440 = vld [vmem:[%s4 + $0xc8] sm:$0xf]
  %v441 = vld [vmem:[%s4 + $0xcc] sm:$0xf]
  %v442 = vld [vmem:[%s4 + $0xd0] sm:$0xf]
  %v443 = vld [vmem:[%s4 + $0xd4] sm:$0xf]
  %v444 = vld [vmem:[%s4 + $0xd8] sm:$0xf]
  %v445 = vld [vmem:[%s4 + $0xdc] sm:$0xf]
  %v446 = vld [vmem:[%s4 + $0xe0] sm:$0xf]
  %v447 = vld [vmem:[%s4 + $0xe4] sm:$0xf]
  %v448 = vld [vmem:[%s4 + $0xe8] sm:$0xf]
  %v449 = vld [vmem:[%s4 + $0xec] sm:$0xf]
  %v450 = vld [vmem:[%s4 + $0xf0] sm:$0xf]
  %v451 = vld [vmem:[%s4 + $0xf4] sm:$0xf]
  %v452 = vld [vmem:[%s4 + $0xf8] sm:$0xf]
  %v453 = vld [vmem:[%s4 + $0xfc] sm:$0xf]
  %v518 = vunpack.c.l.b16 %v390
  %v519 = vunpack.c.l.b16 %v391
  %v520 = vunpack.c.l.b16 %v392
  %v521 = vunpack.c.l.b16 %v393
  %v522 = vunpack.c.l.b16 %v394
  %v523 = vunpack.c.l.b16 %v395
  %v524 = vunpack.c.l.b16 %v396
  %v525 = vunpack.c.l.b16 %v397
  %v526 = vunpack.c.l.b16 %v398
  %v527 = vunpack.c.l.b16 %v399
  %v528 = vunpack.c.l.b16 %v400
  %v529 = vunpack.c.l.b16 %v401
  %v530 = vunpack.c.l.b16 %v402
  %v531 = vunpack.c.l.b16 %v403
  %v532 = vunpack.c.l.b16 %v404
  %v533 = vunpack.c.l.b16 %v405
  %v534 = vunpack.c.l.b16 %v406
  %v535 = vunpack.c.l.b16 %v407
  %v536 = vunpack.c.l.b16 %v408
  %v537 = vunpack.c.l.b16 %v409
  %v538 = vunpack.c.l.b16 %v410
  %v539 = vunpack.c.l.b16 %v411
  %v540 = vunpack.c.l.b16 %v412
  %v541 = vunpack.c.l.b16 %v413
  %v542 = vunpack.c.l.b16 %v414
  %v543 = vunpack.c.l.b16 %v415
  %v544 = vunpack.c.l.b16 %v416
  %v545 = vunpack.c.l.b16 %v417
  %v546 = vunpack.c.l.b16 %v418
  %v547 = vunpack.c.l.b16 %v419
  %v548 = vunpack.c.l.b16 %v420
  %v549 = vunpack.c.l.b16 %v421
  %v550 = vunpack.c.l.b16 %v422
  %v551 = vunpack.c.l.b16 %v423
  %v552 = vunpack.c.l.b16 %v424
  %v553 = vunpack.c.l.b16 %v425
  %v554 = vunpack.c.l.b16 %v426
  %v555 = vunpack.c.l.b16 %v427
  %v556 = vunpack.c.l.b16 %v428
  %v557 = vunpack.c.l.b16 %v429
  %v558 = vunpack.c.l.b16 %v430
  %v559 = vunpack.c.l.b16 %v431
  %v560 = vunpack.c.l.b16 %v432
  %v561 = vunpack.c.l.b16 %v433
  %v562 = vunpack.c.l.b16 %v434
  %v563 = vunpack.c.l.b16 %v435
  %v564 = vunpack.c.l.b16 %v436
  %v565 = vunpack.c.l.b16 %v437
  %v566 = vunpack.c.l.b16 %v438
  %v567 = vunpack.c.l.b16 %v439
  %v568 = vunpack.c.l.b16 %v440
  %v569 = vunpack.c.l.b16 %v441
  %v570 = vunpack.c.l.b16 %v442
  %v571 = vunpack.c.l.b16 %v443
  %v572 = vunpack.c.l.b16 %v444
  %v573 = vunpack.c.l.b16 %v445
  %v574 = vunpack.c.l.b16 %v446
  %v575 = vunpack.c.l.b16 %v447
  %v576 = vunpack.c.l.b16 %v448
  %v577 = vunpack.c.l.b16 %v449
  %v578 = vunpack.c.l.b16 %v450
  %v579 = vunpack.c.l.b16 %v451
  %v580 = vunpack.c.l.b16 %v452
  %v581 = vunpack.c.l.b16 %v453
  %v582 = vpack.c.b16 %v519, %v518
  %v583 = vpack.c.b16 %v521, %v520
  %v584 = vpack.c.b16 %v523, %v522
  %v585 = vpack.c.b16 %v525, %v524
  %v586 = vpack.c.b16 %v527, %v526
  %v587 = vpack.c.b16 %v529, %v528
  %v588 = vpack.c.b16 %v531, %v530
  %v589 = vpack.c.b16 %v533, %v532
  %v590 = vpack.c.b16 %v535, %v534
  %v591 = vpack.c.b16 %v537, %v536
  %v592 = vpack.c.b16 %v539, %v538
  %v593 = vpack.c.b16 %v541, %v540
  %v594 = vpack.c.b16 %v543, %v542
  %v595 = vpack.c.b16 %v545, %v544
  %v596 = vpack.c.b16 %v547, %v546
  %v597 = vpack.c.b16 %v549, %v548
  %v598 = vpack.c.b16 %v551, %v550
  %v599 = vpack.c.b16 %v553, %v552
  %v600 = vpack.c.b16 %v555, %v554
  %v601 = vpack.c.b16 %v557, %v556
  %v602 = vpack.c.b16 %v559, %v558
  %v603 = vpack.c.b16 %v561, %v560
  %v604 = vpack.c.b16 %v563, %v562
  %v605 = vpack.c.b16 %v565, %v564
  %v606 = vpack.c.b16 %v567, %v566
  %v607 = vpack.c.b16 %v569, %v568
  %v608 = vpack.c.b16 %v571, %v570
  %v609 = vpack.c.b16 %v573, %v572
  %v610 = vpack.c.b16 %v575, %v574
  %v611 = vpack.c.b16 %v577, %v576
  %v612 = vpack.c.b16 %v579, %v578
  %v613 = vpack.c.b16 %v581, %v580
  %646 = vmatprep.subr.bf16.mxu0 0
  %647 = vmatpush1.bf16.msra.mxu0 %v582
  %648 = vmatprep.subr.bf16.mxu0 0
  %649 = vmatpush1.bf16.msra.mxu0 %v583
  %650 = vmatprep.subr.bf16.mxu0 0
  %651 = vmatpush1.bf16.msra.mxu0 %v584
  %652 = vmatprep.subr.bf16.mxu0 0
  %653 = vmatpush1.bf16.msra.mxu0 %v585
  %654 = vmatprep.subr.bf16.mxu0 0
  %655 = vmatpush1.bf16.msra.mxu0 %v586
  %656 = vmatprep.subr.bf16.mxu0 0
  %657 = vmatpush1.bf16.msra.mxu0 %v587
  %658 = vmatprep.subr.bf16.mxu0 0
  %659 = vmatpush1.bf16.msra.mxu0 %v588
  %660 = vmatprep.subr.bf16.mxu0 0
  %661 = vmatpush1.bf16.msra.mxu0 %v589
  %662 = vmatprep.subr.bf16.mxu0 0
  %663 = vmatpush1.bf16.msra.mxu0 %v590
  %664 = vmatprep.subr.bf16.mxu0 0
  %665 = vmatpush1.bf16.msra.mxu0 %v591
  %666 = vmatprep.subr.bf16.mxu0 0
  %667 = vmatpush1.bf16.msra.mxu0 %v592
  %668 = vmatprep.subr.bf16.mxu0 0
  %669 = vmatpush1.bf16.msra.mxu0 %v593
  %670 = vmatprep.subr.bf16.mxu0 0
  %671 = vmatpush1.bf16.msra.mxu0 %v594
  %672 = vmatprep.subr.bf16.mxu0 0
  %673 = vmatpush1.bf16.msra.mxu0 %v595
  %674 = vmatprep.subr.bf16.mxu0 0
  %675 = vmatpush1.bf16.msra.mxu0 %v596
  %676 = vmatprep.subr.bf16.mxu0 0
  %677 = vmatpush1.bf16.msra.mxu0 %v597
  %678 = vmatprep.mubr.bf16.mxu0 %v387
  %679 = vmatmul.mubr.bf16.gmra.mrb[0].mxu0 %v386
  %v680 = vpop.f32.mrb[0].mxu0
  %v681 = vadd.f32 %v381, %v680
  %v682 = vpop.f32.mrb[0].mxu0
  %v683 = vpop.f32.mrb[0].mxu0
  %v684 = vpop.f32.mrb[0].mxu0
  %685 = vdwg.mxu0
  %686 = vmatprep.subr.bf16.mxu0 0
  %687 = vmatpush1.bf16.msra.mxu0 %v598
  %688 = vmatprep.subr.bf16.mxu0 0
  %689 = vmatpush1.bf16.msra.mxu0 %v599
  %690 = vmatprep.subr.bf16.mxu0 0
  %691 = vmatpush1.bf16.msra.mxu0 %v600
  %692 = vmatprep.subr.bf16.mxu0 0
  %693 = vmatpush1.bf16.msra.mxu0 %v601
  %694 = vmatprep.subr.bf16.mxu0 0
  %695 = vmatpush1.bf16.msra.mxu0 %v602
  %696 = vmatprep.subr.bf16.mxu0 0
  %697 = vmatpush1.bf16.msra.mxu0 %v603
  %698 = vmatprep.subr.bf16.mxu0 0
  %699 = vmatpush1.bf16.msra.mxu0 %v604
  %700 = vmatprep.subr.bf16.mxu0 0
  %701 = vmatpush1.bf16.msra.mxu0 %v605
  %702 = vmatprep.subr.bf16.mxu0 0
  %703 = vmatpush1.bf16.msra.mxu0 %v606
  %704 = vmatprep.subr.bf16.mxu0 0
  %705 = vmatpush1.bf16.msra.mxu0 %v607
  %706 = vmatprep.subr.bf16.mxu0 0
  %707 = vmatpush1.bf16.msra.mxu0 %v608
  %708 = vmatprep.subr.bf16.mxu0 0
  %709 = vmatpush1.bf16.msra.mxu0 %v609
  %710 = vmatprep.subr.bf16.mxu0 0
  %711 = vmatpush1.bf16.msra.mxu0 %v610
  %712 = vmatprep.subr.bf16.mxu0 0
  %713 = vmatpush1.bf16.msra.mxu0 %v611
  %714 = vmatprep.subr.bf16.mxu0 0
  %715 = vmatpush1.bf16.msra.mxu0 %v612
  %716 = vmatprep.subr.bf16.mxu0 0
  %717 = vmatpush1.bf16.msra.mxu0 %v613
  %718 = vmatprep.mubr.bf16.mxu0 %v389
  %719 = vmatmul.mubr.bf16.gmra.mrb[0].mxu0 %v388
  %v720 = vpop.f32.mrb[0].mxu0
  %v721 = vadd.f32 %v681, %v720
  %v722 = vpop.f32.mrb[0].mxu0
  %v723 = vpop.f32.mrb[0].mxu0
  %v724 = vpop.f32.mrb[0].mxu0
  %725 = vdwg.mxu0
  %v726 = vld [vmem:[%s6] sm:$0x1]
  %v728 = vlaneseq
  %v729 = vshrl.u32 %v728, 7
  %v730 = vsub.s32 0, %v729
  %v731 = vrot.slane %v726, %v730
  %v733 = vadd.f32 %v721, %v731
  %v734 = vmax.f32 %v733, 0.0
  %v735 = vpack.c.bf16 %v734, %v734
  %v736 = vld [vmem:[%s7] sm:$0xf]
  %v737 = vld [vmem:[%s7 + $0x4] sm:$0xf]
  %v738 = vld [vmem:[%s7 + $0x8] sm:$0xf]
  %v739 = vld [vmem:[%s7 + $0xc] sm:$0xf]
  %v740 = vld [vmem:[%s7 + $0x10] sm:$0xf]
  %v741 = vld [vmem:[%s7 + $0x14] sm:$0xf]
  %v742 = vld [vmem:[%s7 + $0x18] sm:$0xf]
  %v743 = vld [vmem:[%s7 + $0x1c] sm:$0xf]
  %v744 = vld [vmem:[%s8] sm:$0x1]
  %v746 = vlaneseq
  %v747 = vshrl.u32 %v746, 7
  %v748 = vsub.s32 0, %v747
  %v749 = vrot.slane %v744, %v748
  %v759 = vunpack.c.l.b16 %v736
  %v760 = vunpack.c.l.b16 %v737
  %v761 = vunpack.c.l.b16 %v738
  %v762 = vunpack.c.l.b16 %v739
  %v763 = vunpack.c.l.b16 %v740
  %v764 = vunpack.c.l.b16 %v741
  %v765 = vunpack.c.l.b16 %v742
  %v766 = vunpack.c.l.b16 %v743
  %v767 = vpack.c.b16 %v760, %v759
  %v768 = vpack.c.b16 %v762, %v761
  %v769 = vpack.c.b16 %v764, %v763
  %v770 = vpack.c.b16 %v766, %v765
  %vm775 = vcmask 523264
  %v777 = vsel %vm775, %v735, 0
  %779 = vmatprep.subr.bf16.mxu0 0
  %780 = vmatpush1.bf16.msra.mxu0 %v767
  %781 = vmatprep.subr.bf16.mxu0 0
  %782 = vmatpush1.bf16.msra.mxu0 %v768
  %783 = vmatprep.subr.bf16.mxu0 0
  %784 = vmatpush1.bf16.msra.mxu0 %v769
  %785 = vmatprep.subr.bf16.mxu0 0
  %786 = vmatpush1.bf16.msra.mxu0 %v770
  %787 = vmatprep.subr.bf16.mxu0 0
  %788 = vmatpush1.bf16.msra.mxu0 0
  %789 = vmatprep.subr.bf16.mxu0 0
  %790 = vmatpush1.bf16.msra.mxu0 0
  %791 = vmatprep.subr.bf16.mxu0 0
  %792 = vmatpush1.bf16.msra.mxu0 0
  %793 = vmatprep.subr.bf16.mxu0 0
  %794 = vmatpush1.bf16.msra.mxu0 0
  %795 = vmatprep.subr.bf16.mxu0 0
  %796 = vmatpush1.bf16.msra.mxu0 0
  %797 = vmatprep.subr.bf16.mxu0 0
  %798 = vmatpush1.bf16.msra.mxu0 0
  %799 = vmatprep.subr.bf16.mxu0 0
  %800 = vmatpush1.bf16.msra.mxu0 0
  %801 = vmatprep.subr.bf16.mxu0 0
  %802 = vmatpush1.bf16.msra.mxu0 0
  %803 = vmatprep.subr.bf16.mxu0 0
  %804 = vmatpush1.bf16.msra.mxu0 0
  %805 = vmatprep.subr.bf16.mxu0 0
  %806 = vmatpush1.bf16.msra.mxu0 0
  %807 = vmatprep.subr.bf16.mxu0 0
  %808 = vmatpush1.bf16.msra.mxu0 0
  %809 = vmatprep.subr.bf16.mxu0 0
  %810 = vmatpush1.bf16.msra.mxu0 0
  %811 = vmatprep.mubr.bf16.mxu0 0
  %812 = vmatmul.mubr.bf16.gmra.mrb[0].mxu0 %v777
  %v813 = vpop.f32.mrb[0].mxu0
  %v814 = vadd.f32 %v749, %v813
  %v815 = vpop.f32.mrb[0].mxu0
  %v816 = vpop.f32.mrb[0].mxu0
  %v817 = vpop.f32.mrb[0].mxu0
  %818 = vdwg.mxu0
  %819 = vst.msk [vmem:[%s9] sm:$0xff] %vm338, %v814
  // Predicated region
  $region38: #{dqn_forward.1} parent=0 // pred_check
    _
  $region39: #{dqn_forward.1} parent=0 // pred_check_branch
    %821 = sbr.rel (0) target = $region41
  $region40: #{dqn_forward.1} parent=0 // pred_region
    _
  $region41: #{dqn_forward.1} parent=0 // pred_fallthru
    _
  // Predicated region
  $region42: #{dqn_forward.1} parent=0 // pred_check
    _
  $region43: #{dqn_forward.1} parent=0 // pred_check_branch
    %823 = sbr.rel (0) target = $region45
  $region44: #{dqn_forward.1} parent=0 // pred_region
    _
  $region45: #{dqn_forward.1} parent=0 // pred_fallthru
    _

</llo_original>
